<compile_context>
chip_gen: v5e
topology: v5e:2x2
jax: 0.10.0
libtpu: 0.0.40
codegen_flags: <defaults>
</compile_context>

<pallas_src>
import jax
import jax.numpy as jnp
from jax.experimental import pallas as pl
from jax.experimental.pallas import tpu as pltpu


def _make_lstm_linear_kernel(B, T, H, O):
    fourH = 4 * H

    def kernel(x_ref, wih_ref, whh_ref, b_ref, wlin_ref, blin_ref, y_ref):
        # ---- hoisted input projection: one matmul for all timesteps ----------
        # x_ref is time-major (T*B, I); g-gate columns of wih/whh/b are pre-scaled
        # by 2 in the wrapper (sigmoid-only trick).
        proj = (jnp.dot(x_ref[...], wih_ref[...],
                        preferred_element_type=jnp.float32)
                + b_ref[...])                                     # (T*B, 4H)

        whh = whh_ref[...]                                        # (H, 4H), resident

        # Lane mask selecting the g-gate columns [2H, 3H) — built once.
        lane = jax.lax.broadcasted_iota(jnp.int32, (B, fourH), 1)
        is_g = (lane >= 2 * H) & (lane < 3 * H)

        # PyTorch default h0 = c0 = 0 when no initial state is given.
        h = jnp.zeros((B, H), jnp.float32)
        c = jnp.zeros((B, H), jnp.float32)

        hs = []  # per-step hidden states kept in vregs (tiny: B*H f32 each)
        # ---- recurrence: statically unrolled (T small and static) ------------
        # TODO(synk): for large T, switch to lax.fori_loop(..., unroll=2..4) with
        # proj and hs in VMEM scratch to bound live ranges / instruction count.
        for t in range(T):
            gates = proj[t * B:(t + 1) * B, :] + jnp.dot(
                h, whh, preferred_element_type=jnp.float32)       # (B, 4H)
            sig = jax.nn.sigmoid(gates)                           # ONE full-width EUP pass
            # g lanes carried 2x pre-activation -> tanh(x) = 2*sigmoid(2x) - 1.
            act = jnp.where(is_g, sig + sig - 1.0, sig)
            i_g = act[:, 0 * H:1 * H]
            f_g = act[:, 1 * H:2 * H]
            g_g = act[:, 2 * H:3 * H]
            o_g = act[:, 3 * H:4 * H]
            c = f_g * c + i_g * g_g
            h = o_g * jnp.tanh(c)                                 # H-wide tanh only
            hs.append(h)

        # ---- fused output Linear over all timesteps, one matmul + one store --
        hs_all = jnp.concatenate(hs, axis=0)                      # (T*B, H), time-major
        y = (jnp.dot(hs_all, wlin_ref[...], preferred_element_type=jnp.float32)
             + blin_ref[...])                                     # (T*B, O)
        y_ref[...] = y

    return kernel


@jax.jit
def model_lst_forward(x, w_ih, w_hh, b_ih, b_hh, w_lin, b_lin):
    """x: (B, T, input_size).  Returns (B, T, output_size) float32 (batch-first)."""
    x = x.astype(jnp.float32)
    B, T, I = x.shape
    fourH = w_ih.shape[0]
    H = fourH // 4
    O = w_lin.shape[0]

    # Pre-transposed weights (tiny, one-time) so the kernel does plain x @ W,
    # with the g-gate columns [2H, 3H) pre-scaled by 2 for the sigmoid-only trick.
    gate_scale = jnp.where(
        (jnp.arange(fourH) >= 2 * H) & (jnp.arange(fourH) < 3 * H), 2.0, 1.0
    ).astype(jnp.float32)                                          # (4H,)
    w_ih_t = (jnp.transpose(w_ih).astype(jnp.float32) * gate_scale)   # (I, 4H)
    w_hh_t = (jnp.transpose(w_hh).astype(jnp.float32) * gate_scale)   # (H, 4H)
    b = ((b_ih + b_hh).astype(jnp.float32) * gate_scale).reshape(1, fourH)  # (1, 4H)
    w_lin_t = jnp.transpose(w_lin).astype(jnp.float32)             # (H, O)
    b_lin_r = b_lin.astype(jnp.float32).reshape(1, O)              # (1, O)

    # Time-major 2D input: (T*B, I).  Cheap wrapper-side layout plumbing.
    x_tm = jnp.transpose(x, (1, 0, 2)).reshape(T * B, I)

    flops = 2 * T * B * I * fourH + T * 2 * B * H * fourH + 2 * T * B * H * O
    transcendentals = T * B * (fourH + H)
    bytes_accessed = 4 * (T * B * I + I * fourH + H * fourH + fourH
                          + H * O + O + T * B * O)

    y_tm = pl.pallas_call(
        _make_lstm_linear_kernel(B, T, H, O),
        out_shape=jax.ShapeDtypeStruct((T * B, O), jnp.float32),
        # Single invocation (no grid): every operand is one whole-array VMEM block,
        # DMA'd exactly once; weights stay resident across the whole time loop.
        in_specs=[pl.BlockSpec(memory_space=pltpu.MemorySpace.VMEM)] * 6,
        out_specs=pl.BlockSpec(memory_space=pltpu.MemorySpace.VMEM),
        cost_estimate=pl.CostEstimate(flops=flops,
                                      transcendentals=transcendentals,
                                      bytes_accessed=bytes_accessed),
    )(x_tm, w_ih_t, w_hh_t, b, w_lin_t, b_lin_r)

    # Back to batch-first (B, T, O) in the wrapper (free layout plumbing).
    return jnp.transpose(y_tm.reshape(T, B, O), (1, 0, 2))


def _reference_forward(x, w_ih, w_hh, b_ih, b_hh, w_lin, b_lin):
    """Pure-JAX reference matching torch.nn.LSTM(batch_first=True) + Linear."""
    x = x.astype(jnp.float32)
    B, T, I = x.shape
    H = w_hh.shape[1]

    def step(carry, xt):
        h, c = carry
        gates = xt @ w_ih.T + b_ih + h @ w_hh.T + b_hh
        i = jax.nn.sigmoid(gates[:, 0 * H:1 * H])
        f = jax.nn.sigmoid(gates[:, 1 * H:2 * H])
        g = jnp.tanh(gates[:, 2 * H:3 * H])
        o = jax.nn.sigmoid(gates[:, 3 * H:4 * H])
        c = f * c + i * g
        h = o * jnp.tanh(c)
        return (h, c), h

    h0 = jnp.zeros((B, H), jnp.float32)
    c0 = jnp.zeros((B, H), jnp.float32)
    _, hs = jax.lax.scan(step, (h0, c0), jnp.transpose(x, (1, 0, 2)))
    y = hs @ w_lin.T + b_lin                                       # (T, B, O)
    return jnp.transpose(y, (1, 0, 2))


if __name__ == "__main__":
    # Small shapes consistent with the module's forward.
    B, T = 2, 8
    input_size, hidden_size, output_size = 16, 32, 8

    key = jax.random.PRNGKey(0)
    ks = jax.random.split(key, 8)

    # Deterministic init, mimicking PyTorch's uniform(-1/sqrt(H), 1/sqrt(H)).
    bound = 1.0 / (hidden_size ** 0.5)
    w_ih = jax.random.uniform(ks[0], (4 * hidden_size, input_size), jnp.float32, -bound, bound)
    w_hh = jax.random.uniform(ks[1], (4 * hidden_size, hidden_size), jnp.float32, -bound, bound)
    b_ih = jax.random.uniform(ks[2], (4 * hidden_size,), jnp.float32, -bound, bound)
    b_hh = jax.random.uniform(ks[3], (4 * hidden_size,), jnp.float32, -bound, bound)
    w_lin = jax.random.uniform(ks[4], (output_size, hidden_size), jnp.float32, -bound, bound)
    b_lin = jax.random.uniform(ks[5], (output_size,), jnp.float32, -bound, bound)

    x = jax.random.normal(ks[6], (B, T, input_size), jnp.float32)

    y = model_lst_forward(x, w_ih, w_hh, b_ih, b_hh, w_lin, b_lin)
    y = jax.block_until_ready(y)

    y_ref = _reference_forward(x, w_ih, w_hh, b_ih, b_hh, w_lin, b_lin)
    assert y.shape == (B, T, output_size)
    # tanh(x) = 2*sigmoid(2x)-1 is mathematically exact; tolerance covers f32 rounding.
    assert jnp.allclose(y, y_ref, atol=1e-4, rtol=1e-4), "mismatch vs reference"

    print("KERNEL_OK")
</pallas_src>

<mosaic_0001>
module attributes {stable_mosaic.version = 11 : i64} {
  func.func @kernel(%arg0: memref<16x16xf32, #tpu.memory_space<vmem>>, %arg1: memref<16x128xf32, #tpu.memory_space<vmem>>, %arg2: memref<32x128xf32, #tpu.memory_space<vmem>>, %arg3: memref<1x128xf32, #tpu.memory_space<vmem>>, %arg4: memref<32x8xf32, #tpu.memory_space<vmem>>, %arg5: memref<1x8xf32, #tpu.memory_space<vmem>>, %arg6: memref<16x8xf32, #tpu.memory_space<vmem>>) attributes {dimension_semantics = [], scalar_prefetch = 0 : i64, scratch_operands = 0 : i64, tpu.core_type = #tpu.core_type<tc>} {
    %c0 = arith.constant 0 : index
    %c0_0 = arith.constant 0 : index
    %0 = vector.load %arg0[%c0, %c0_0] : memref<16x16xf32, #tpu.memory_space<vmem>>, vector<16x16xf32>
    %c0_1 = arith.constant 0 : index
    %c0_2 = arith.constant 0 : index
    %1 = vector.load %arg1[%c0_1, %c0_2] : memref<16x128xf32, #tpu.memory_space<vmem>>, vector<16x128xf32>
    %cst = arith.constant dense<0.000000e+00> : vector<16x128xf32>
    %2 = tpu.matmul %0, %1, %cst {dimension_numbers = #tpu.dot_dimension_numbers<[1], [0], [0], [1], [0, 0, 1, 1], [], []>} : vector<16x16xf32>, vector<16x128xf32>, vector<16x128xf32> -> vector<16x128xf32>
    %c0_3 = arith.constant 0 : index
    %c0_4 = arith.constant 0 : index
    %3 = vector.load %arg3[%c0_3, %c0_4] : memref<1x128xf32, #tpu.memory_space<vmem>>, vector<1x128xf32>
    %4 = vector.broadcast %3 : vector<1x128xf32> to vector<16x128xf32>
    %5 = arith.addf %2, %4 : vector<16x128xf32>
    %c0_5 = arith.constant 0 : index
    %c0_6 = arith.constant 0 : index
    %6 = vector.load %arg2[%c0_5, %c0_6] : memref<32x128xf32, #tpu.memory_space<vmem>>, vector<32x128xf32>
    %7 = tpu.iota {dimensions = array<i32: 1>} : vector<2x128xi32>
    %c64_i32 = arith.constant 64 : i32
    %8 = vector.broadcast %c64_i32 : i32 to vector<2x128xi32>
    %9 = arith.cmpi sge, %7, %8 : vector<2x128xi32>
    %c96_i32 = arith.constant 96 : i32
    %10 = vector.broadcast %c96_i32 : i32 to vector<2x128xi32>
    %11 = arith.cmpi slt, %7, %10 : vector<2x128xi32>
    %12 = arith.andi %9, %11 : vector<2x128xi1>
    %cst_7 = arith.constant 0.000000e+00 : f32
    %13 = vector.broadcast %cst_7 : f32 to vector<2x32xf32>
    %cst_8 = arith.constant 0.000000e+00 : f32
    %14 = vector.broadcast %cst_8 : f32 to vector<2x32xf32>
    %15 = vector.extract_strided_slice %5 {offsets = [0, 0], sizes = [2, 128], strides = [1, 1]} : vector<16x128xf32> to vector<2x128xf32>
    %cst_9 = arith.constant dense<0.000000e+00> : vector<2x128xf32>
    %16 = tpu.matmul %13, %6, %cst_9 {dimension_numbers = #tpu.dot_dimension_numbers<[1], [0], [0], [1], [0, 0, 1, 1], [], []>} : vector<2x32xf32>, vector<32x128xf32>, vector<2x128xf32> -> vector<2x128xf32>
    %17 = arith.addf %15, %16 : vector<2x128xf32>
    %18 = arith.negf %17 : vector<2x128xf32>
    %19 = math.exp %18 : vector<2x128xf32>
    %cst_10 = arith.constant 1.000000e+00 : f32
    %20 = vector.broadcast %cst_10 : f32 to vector<2x128xf32>
    %21 = arith.addf %20, %19 : vector<2x128xf32>
    %22 = arith.divf %20, %21 : vector<2x128xf32>
    %23 = arith.addf %22, %22 : vector<2x128xf32>
    %cst_11 = arith.constant 1.000000e+00 : f32
    %24 = vector.broadcast %cst_11 : f32 to vector<2x128xf32>
    %25 = arith.subf %23, %24 : vector<2x128xf32>
    %26 = arith.select %12, %25, %22 : vector<2x128xi1>, vector<2x128xf32>
    %27 = vector.extract_strided_slice %26 {offsets = [0, 0], sizes = [2, 32], strides = [1, 1]} : vector<2x128xf32> to vector<2x32xf32>
    %28 = vector.extract_strided_slice %26 {offsets = [0, 32], sizes = [2, 32], strides = [1, 1]} : vector<2x128xf32> to vector<2x32xf32>
    %29 = vector.extract_strided_slice %26 {offsets = [0, 64], sizes = [2, 32], strides = [1, 1]} : vector<2x128xf32> to vector<2x32xf32>
    %30 = vector.extract_strided_slice %26 {offsets = [0, 96], sizes = [2, 32], strides = [1, 1]} : vector<2x128xf32> to vector<2x32xf32>
    %31 = arith.mulf %28, %14 : vector<2x32xf32>
    %32 = arith.mulf %27, %29 : vector<2x32xf32>
    %33 = arith.addf %31, %32 : vector<2x32xf32>
    %34 = math.tanh %33 : vector<2x32xf32>
    %35 = arith.mulf %30, %34 : vector<2x32xf32>
    %36 = vector.extract_strided_slice %5 {offsets = [2, 0], sizes = [2, 128], strides = [1, 1]} : vector<16x128xf32> to vector<2x128xf32>
    %cst_12 = arith.constant dense<0.000000e+00> : vector<2x128xf32>
    %37 = tpu.matmul %35, %6, %cst_12 {dimension_numbers = #tpu.dot_dimension_numbers<[1], [0], [0], [1], [0, 0, 1, 1], [], []>} : vector<2x32xf32>, vector<32x128xf32>, vector<2x128xf32> -> vector<2x128xf32>
    %38 = arith.addf %36, %37 : vector<2x128xf32>
    %39 = arith.negf %38 : vector<2x128xf32>
    %40 = math.exp %39 : vector<2x128xf32>
    %cst_13 = arith.constant 1.000000e+00 : f32
    %41 = vector.broadcast %cst_13 : f32 to vector<2x128xf32>
    %42 = arith.addf %41, %40 : vector<2x128xf32>
    %43 = arith.divf %41, %42 : vector<2x128xf32>
    %44 = arith.addf %43, %43 : vector<2x128xf32>
    %cst_14 = arith.constant 1.000000e+00 : f32
    %45 = vector.broadcast %cst_14 : f32 to vector<2x128xf32>
    %46 = arith.subf %44, %45 : vector<2x128xf32>
    %47 = arith.select %12, %46, %43 : vector<2x128xi1>, vector<2x128xf32>
    %48 = vector.extract_strided_slice %47 {offsets = [0, 0], sizes = [2, 32], strides = [1, 1]} : vector<2x128xf32> to vector<2x32xf32>
    %49 = vector.extract_strided_slice %47 {offsets = [0, 32], sizes = [2, 32], strides = [1, 1]} : vector<2x128xf32> to vector<2x32xf32>
    %50 = vector.extract_strided_slice %47 {offsets = [0, 64], sizes = [2, 32], strides = [1, 1]} : vector<2x128xf32> to vector<2x32xf32>
    %51 = vector.extract_strided_slice %47 {offsets = [0, 96], sizes = [2, 32], strides = [1, 1]} : vector<2x128xf32> to vector<2x32xf32>
    %52 = arith.mulf %49, %33 : vector<2x32xf32>
    %53 = arith.mulf %48, %50 : vector<2x32xf32>
    %54 = arith.addf %52, %53 : vector<2x32xf32>
    %55 = math.tanh %54 : vector<2x32xf32>
    %56 = arith.mulf %51, %55 : vector<2x32xf32>
    %57 = vector.extract_strided_slice %5 {offsets = [4, 0], sizes = [2, 128], strides = [1, 1]} : vector<16x128xf32> to vector<2x128xf32>
    %cst_15 = arith.constant dense<0.000000e+00> : vector<2x128xf32>
    %58 = tpu.matmul %56, %6, %cst_15 {dimension_numbers = #tpu.dot_dimension_numbers<[1], [0], [0], [1], [0, 0, 1, 1], [], []>} : vector<2x32xf32>, vector<32x128xf32>, vector<2x128xf32> -> vector<2x128xf32>
    %59 = arith.addf %57, %58 : vector<2x128xf32>
    %60 = arith.negf %59 : vector<2x128xf32>
    %61 = math.exp %60 : vector<2x128xf32>
    %cst_16 = arith.constant 1.000000e+00 : f32
    %62 = vector.broadcast %cst_16 : f32 to vector<2x128xf32>
    %63 = arith.addf %62, %61 : vector<2x128xf32>
    %64 = arith.divf %62, %63 : vector<2x128xf32>
    %65 = arith.addf %64, %64 : vector<2x128xf32>
    %cst_17 = arith.constant 1.000000e+00 : f32
    %66 = vector.broadcast %cst_17 : f32 to vector<2x128xf32>
    %67 = arith.subf %65, %66 : vector<2x128xf32>
    %68 = arith.select %12, %67, %64 : vector<2x128xi1>, vector<2x128xf32>
    %69 = vector.extract_strided_slice %68 {offsets = [0, 0], sizes = [2, 32], strides = [1, 1]} : vector<2x128xf32> to vector<2x32xf32>
    %70 = vector.extract_strided_slice %68 {offsets = [0, 32], sizes = [2, 32], strides = [1, 1]} : vector<2x128xf32> to vector<2x32xf32>
    %71 = vector.extract_strided_slice %68 {offsets = [0, 64], sizes = [2, 32], strides = [1, 1]} : vector<2x128xf32> to vector<2x32xf32>
    %72 = vector.extract_strided_slice %68 {offsets = [0, 96], sizes = [2, 32], strides = [1, 1]} : vector<2x128xf32> to vector<2x32xf32>
    %73 = arith.mulf %70, %54 : vector<2x32xf32>
    %74 = arith.mulf %69, %71 : vector<2x32xf32>
    %75 = arith.addf %73, %74 : vector<2x32xf32>
    %76 = math.tanh %75 : vector<2x32xf32>
    %77 = arith.mulf %72, %76 : vector<2x32xf32>
    %78 = vector.extract_strided_slice %5 {offsets = [6, 0], sizes = [2, 128], strides = [1, 1]} : vector<16x128xf32> to vector<2x128xf32>
    %cst_18 = arith.constant dense<0.000000e+00> : vector<2x128xf32>
    %79 = tpu.matmul %77, %6, %cst_18 {dimension_numbers = #tpu.dot_dimension_numbers<[1], [0], [0], [1], [0, 0, 1, 1], [], []>} : vector<2x32xf32>, vector<32x128xf32>, vector<2x128xf32> -> vector<2x128xf32>
    %80 = arith.addf %78, %79 : vector<2x128xf32>
    %81 = arith.negf %80 : vector<2x128xf32>
    %82 = math.exp %81 : vector<2x128xf32>
    %cst_19 = arith.constant 1.000000e+00 : f32
    %83 = vector.broadcast %cst_19 : f32 to vector<2x128xf32>
    %84 = arith.addf %83, %82 : vector<2x128xf32>
    %85 = arith.divf %83, %84 : vector<2x128xf32>
    %86 = arith.addf %85, %85 : vector<2x128xf32>
    %cst_20 = arith.constant 1.000000e+00 : f32
    %87 = vector.broadcast %cst_20 : f32 to vector<2x128xf32>
    %88 = arith.subf %86, %87 : vector<2x128xf32>
    %89 = arith.select %12, %88, %85 : vector<2x128xi1>, vector<2x128xf32>
    %90 = vector.extract_strided_slice %89 {offsets = [0, 0], sizes = [2, 32], strides = [1, 1]} : vector<2x128xf32> to vector<2x32xf32>
    %91 = vector.extract_strided_slice %89 {offsets = [0, 32], sizes = [2, 32], strides = [1, 1]} : vector<2x128xf32> to vector<2x32xf32>
    %92 = vector.extract_strided_slice %89 {offsets = [0, 64], sizes = [2, 32], strides = [1, 1]} : vector<2x128xf32> to vector<2x32xf32>
    %93 = vector.extract_strided_slice %89 {offsets = [0, 96], sizes = [2, 32], strides = [1, 1]} : vector<2x128xf32> to vector<2x32xf32>
    %94 = arith.mulf %91, %75 : vector<2x32xf32>
    %95 = arith.mulf %90, %92 : vector<2x32xf32>
    %96 = arith.addf %94, %95 : vector<2x32xf32>
    %97 = math.tanh %96 : vector<2x32xf32>
    %98 = arith.mulf %93, %97 : vector<2x32xf32>
    %99 = vector.extract_strided_slice %5 {offsets = [8, 0], sizes = [2, 128], strides = [1, 1]} : vector<16x128xf32> to vector<2x128xf32>
    %cst_21 = arith.constant dense<0.000000e+00> : vector<2x128xf32>
    %100 = tpu.matmul %98, %6, %cst_21 {dimension_numbers = #tpu.dot_dimension_numbers<[1], [0], [0], [1], [0, 0, 1, 1], [], []>} : vector<2x32xf32>, vector<32x128xf32>, vector<2x128xf32> -> vector<2x128xf32>
    %101 = arith.addf %99, %100 : vector<2x128xf32>
    %102 = arith.negf %101 : vector<2x128xf32>
    %103 = math.exp %102 : vector<2x128xf32>
    %cst_22 = arith.constant 1.000000e+00 : f32
    %104 = vector.broadcast %cst_22 : f32 to vector<2x128xf32>
    %105 = arith.addf %104, %103 : vector<2x128xf32>
    %106 = arith.divf %104, %105 : vector<2x128xf32>
    %107 = arith.addf %106, %106 : vector<2x128xf32>
    %cst_23 = arith.constant 1.000000e+00 : f32
    %108 = vector.broadcast %cst_23 : f32 to vector<2x128xf32>
    %109 = arith.subf %107, %108 : vector<2x128xf32>
    %110 = arith.select %12, %109, %106 : vector<2x128xi1>, vector<2x128xf32>
    %111 = vector.extract_strided_slice %110 {offsets = [0, 0], sizes = [2, 32], strides = [1, 1]} : vector<2x128xf32> to vector<2x32xf32>
    %112 = vector.extract_strided_slice %110 {offsets = [0, 32], sizes = [2, 32], strides = [1, 1]} : vector<2x128xf32> to vector<2x32xf32>
    %113 = vector.extract_strided_slice %110 {offsets = [0, 64], sizes = [2, 32], strides = [1, 1]} : vector<2x128xf32> to vector<2x32xf32>
    %114 = vector.extract_strided_slice %110 {offsets = [0, 96], sizes = [2, 32], strides = [1, 1]} : vector<2x128xf32> to vector<2x32xf32>
    %115 = arith.mulf %112, %96 : vector<2x32xf32>
    %116 = arith.mulf %111, %113 : vector<2x32xf32>
    %117 = arith.addf %115, %116 : vector<2x32xf32>
    %118 = math.tanh %117 : vector<2x32xf32>
    %119 = arith.mulf %114, %118 : vector<2x32xf32>
    %120 = vector.extract_strided_slice %5 {offsets = [10, 0], sizes = [2, 128], strides = [1, 1]} : vector<16x128xf32> to vector<2x128xf32>
    %cst_24 = arith.constant dense<0.000000e+00> : vector<2x128xf32>
    %121 = tpu.matmul %119, %6, %cst_24 {dimension_numbers = #tpu.dot_dimension_numbers<[1], [0], [0], [1], [0, 0, 1, 1], [], []>} : vector<2x32xf32>, vector<32x128xf32>, vector<2x128xf32> -> vector<2x128xf32>
    %122 = arith.addf %120, %121 : vector<2x128xf32>
    %123 = arith.negf %122 : vector<2x128xf32>
    %124 = math.exp %123 : vector<2x128xf32>
    %cst_25 = arith.constant 1.000000e+00 : f32
    %125 = vector.broadcast %cst_25 : f32 to vector<2x128xf32>
    %126 = arith.addf %125, %124 : vector<2x128xf32>
    %127 = arith.divf %125, %126 : vector<2x128xf32>
    %128 = arith.addf %127, %127 : vector<2x128xf32>
    %cst_26 = arith.constant 1.000000e+00 : f32
    %129 = vector.broadcast %cst_26 : f32 to vector<2x128xf32>
    %130 = arith.subf %128, %129 : vector<2x128xf32>
    %131 = arith.select %12, %130, %127 : vector<2x128xi1>, vector<2x128xf32>
    %132 = vector.extract_strided_slice %131 {offsets = [0, 0], sizes = [2, 32], strides = [1, 1]} : vector<2x128xf32> to vector<2x32xf32>
    %133 = vector.extract_strided_slice %131 {offsets = [0, 32], sizes = [2, 32], strides = [1, 1]} : vector<2x128xf32> to vector<2x32xf32>
    %134 = vector.extract_strided_slice %131 {offsets = [0, 64], sizes = [2, 32], strides = [1, 1]} : vector<2x128xf32> to vector<2x32xf32>
    %135 = vector.extract_strided_slice %131 {offsets = [0, 96], sizes = [2, 32], strides = [1, 1]} : vector<2x128xf32> to vector<2x32xf32>
    %136 = arith.mulf %133, %117 : vector<2x32xf32>
    %137 = arith.mulf %132, %134 : vector<2x32xf32>
    %138 = arith.addf %136, %137 : vector<2x32xf32>
    %139 = math.tanh %138 : vector<2x32xf32>
    %140 = arith.mulf %135, %139 : vector<2x32xf32>
    %141 = vector.extract_strided_slice %5 {offsets = [12, 0], sizes = [2, 128], strides = [1, 1]} : vector<16x128xf32> to vector<2x128xf32>
    %cst_27 = arith.constant dense<0.000000e+00> : vector<2x128xf32>
    %142 = tpu.matmul %140, %6, %cst_27 {dimension_numbers = #tpu.dot_dimension_numbers<[1], [0], [0], [1], [0, 0, 1, 1], [], []>} : vector<2x32xf32>, vector<32x128xf32>, vector<2x128xf32> -> vector<2x128xf32>
    %143 = arith.addf %141, %142 : vector<2x128xf32>
    %144 = arith.negf %143 : vector<2x128xf32>
    %145 = math.exp %144 : vector<2x128xf32>
    %cst_28 = arith.constant 1.000000e+00 : f32
    %146 = vector.broadcast %cst_28 : f32 to vector<2x128xf32>
    %147 = arith.addf %146, %145 : vector<2x128xf32>
    %148 = arith.divf %146, %147 : vector<2x128xf32>
    %149 = arith.addf %148, %148 : vector<2x128xf32>
    %cst_29 = arith.constant 1.000000e+00 : f32
    %150 = vector.broadcast %cst_29 : f32 to vector<2x128xf32>
    %151 = arith.subf %149, %150 : vector<2x128xf32>
    %152 = arith.select %12, %151, %148 : vector<2x128xi1>, vector<2x128xf32>
    %153 = vector.extract_strided_slice %152 {offsets = [0, 0], sizes = [2, 32], strides = [1, 1]} : vector<2x128xf32> to vector<2x32xf32>
    %154 = vector.extract_strided_slice %152 {offsets = [0, 32], sizes = [2, 32], strides = [1, 1]} : vector<2x128xf32> to vector<2x32xf32>
    %155 = vector.extract_strided_slice %152 {offsets = [0, 64], sizes = [2, 32], strides = [1, 1]} : vector<2x128xf32> to vector<2x32xf32>
    %156 = vector.extract_strided_slice %152 {offsets = [0, 96], sizes = [2, 32], strides = [1, 1]} : vector<2x128xf32> to vector<2x32xf32>
    %157 = arith.mulf %154, %138 : vector<2x32xf32>
    %158 = arith.mulf %153, %155 : vector<2x32xf32>
    %159 = arith.addf %157, %158 : vector<2x32xf32>
    %160 = math.tanh %159 : vector<2x32xf32>
    %161 = arith.mulf %156, %160 : vector<2x32xf32>
    %162 = vector.extract_strided_slice %5 {offsets = [14, 0], sizes = [2, 128], strides = [1, 1]} : vector<16x128xf32> to vector<2x128xf32>
    %cst_30 = arith.constant dense<0.000000e+00> : vector<2x128xf32>
    %163 = tpu.matmul %161, %6, %cst_30 {dimension_numbers = #tpu.dot_dimension_numbers<[1], [0], [0], [1], [0, 0, 1, 1], [], []>} : vector<2x32xf32>, vector<32x128xf32>, vector<2x128xf32> -> vector<2x128xf32>
    %164 = arith.addf %162, %163 : vector<2x128xf32>
    %165 = arith.negf %164 : vector<2x128xf32>
    %166 = math.exp %165 : vector<2x128xf32>
    %cst_31 = arith.constant 1.000000e+00 : f32
    %167 = vector.broadcast %cst_31 : f32 to vector<2x128xf32>
    %168 = arith.addf %167, %166 : vector<2x128xf32>
    %169 = arith.divf %167, %168 : vector<2x128xf32>
    %170 = arith.addf %169, %169 : vector<2x128xf32>
    %cst_32 = arith.constant 1.000000e+00 : f32
    %171 = vector.broadcast %cst_32 : f32 to vector<2x128xf32>
    %172 = arith.subf %170, %171 : vector<2x128xf32>
    %173 = arith.select %12, %172, %169 : vector<2x128xi1>, vector<2x128xf32>
    %174 = vector.extract_strided_slice %173 {offsets = [0, 0], sizes = [2, 32], strides = [1, 1]} : vector<2x128xf32> to vector<2x32xf32>
    %175 = vector.extract_strided_slice %173 {offsets = [0, 32], sizes = [2, 32], strides = [1, 1]} : vector<2x128xf32> to vector<2x32xf32>
    %176 = vector.extract_strided_slice %173 {offsets = [0, 64], sizes = [2, 32], strides = [1, 1]} : vector<2x128xf32> to vector<2x32xf32>
    %177 = vector.extract_strided_slice %173 {offsets = [0, 96], sizes = [2, 32], strides = [1, 1]} : vector<2x128xf32> to vector<2x32xf32>
    %178 = arith.mulf %175, %159 : vector<2x32xf32>
    %179 = arith.mulf %174, %176 : vector<2x32xf32>
    %180 = arith.addf %178, %179 : vector<2x32xf32>
    %181 = math.tanh %180 : vector<2x32xf32>
    %182 = arith.mulf %177, %181 : vector<2x32xf32>
    %183 = tpu.concatenate %35, %56, %77, %98, %119, %140, %161, %182 in 0 : vector<2x32xf32>, vector<2x32xf32>, vector<2x32xf32>, vector<2x32xf32>, vector<2x32xf32>, vector<2x32xf32>, vector<2x32xf32>, vector<2x32xf32> -> vector<16x32xf32>
    %c0_33 = arith.constant 0 : index
    %c0_34 = arith.constant 0 : index
    %184 = vector.load %arg4[%c0_33, %c0_34] : memref<32x8xf32, #tpu.memory_space<vmem>>, vector<32x8xf32>
    %cst_35 = arith.constant dense<0.000000e+00> : vector<16x8xf32>
    %185 = tpu.matmul %183, %184, %cst_35 {dimension_numbers = #tpu.dot_dimension_numbers<[1], [0], [0], [1], [0, 0, 1, 1], [], []>} : vector<16x32xf32>, vector<32x8xf32>, vector<16x8xf32> -> vector<16x8xf32>
    %c0_36 = arith.constant 0 : index
    %c0_37 = arith.constant 0 : index
    %186 = vector.load %arg5[%c0_36, %c0_37] : memref<1x8xf32, #tpu.memory_space<vmem>>, vector<1x8xf32>
    %187 = vector.broadcast %186 : vector<1x8xf32> to vector<16x8xf32>
    %188 = arith.addf %185, %187 : vector<16x8xf32>
    %c0_38 = arith.constant 0 : index
    %c0_39 = arith.constant 0 : index
    %189 = vector.load %arg6[%c0_38, %c0_39] : memref<16x8xf32, #tpu.memory_space<vmem>>, vector<16x8xf32>
    tpu.vector_store %arg6[%c0_38, %c0_39], %188 {strides = array<i32>} : memref<16x8xf32, #tpu.memory_space<vmem>>, vector<16x8xf32>,
    return
  }
}

</mosaic_0001>

<llo_original>
// kernel: model_lst_forward.1
$region0: #{model_lst_forward.1}
  #allocation0 [shape = 'u32[]', space=smem, size = 0x4, offset = 0x4, fixed_abs, tag = 'smem constant byte address 0x4 - core index']
  #allocation1 [shape = 'u32[72,128]{1,0:T(1,128)}', space=vmem, size = 0x9000, scoped, tag = 'internal scratch']
  %s0 = inlined_call_operand.vmem [shape: f32[16,16], index: 0, kind: input, shape index: {}]
  %s1 = inlined_call_operand.vmem [shape: f32[16,128], index: 1, kind: input, shape index: {}]
  %s2 = inlined_call_operand.vmem [shape: f32[32,128], index: 2, kind: input, shape index: {}]
  %s3 = inlined_call_operand.vmem [shape: f32[1,128], index: 3, kind: input, shape index: {}]
  %s4 = inlined_call_operand.vmem [shape: f32[32,8], index: 4, kind: input, shape index: {}]
  %s5 = inlined_call_operand.vmem [shape: f32[1,8], index: 5, kind: input, shape index: {}]
  %s6 = inlined_call_operand.vmem [shape: f32[16,8], index: 6, kind: output, shape index: {}]
  %s7 = sld [smem:[#allocation0]]
  $region34: #{model_lst_forward.1} parent=0
    _
  %s9 = ssub.s32 1, %s7
  %s10 = scalar_select 0, %s9, %s7
  // Predicated region
  $region2: #{model_lst_forward.1} parent=0 // pred_check
    _
  $region3: #{model_lst_forward.1} parent=0 // pred_check_branch
    %12 = sbr.rel (0) target = $region5
  $region4: #{model_lst_forward.1} parent=0 // pred_region
    _
  $region5: #{model_lst_forward.1} parent=0 // pred_fallthru
    _
  // Predicated region
  $region6: #{model_lst_forward.1} parent=0 // pred_check
    _
  $region7: #{model_lst_forward.1} parent=0 // pred_check_branch
    %14 = sbr.rel (0) target = $region9
  $region8: #{model_lst_forward.1} parent=0 // pred_region
    _
  $region9: #{model_lst_forward.1} parent=0 // pred_fallthru
    _
  // Predicated region
  $region10: #{model_lst_forward.1} parent=0 // pred_check
    _
  $region11: #{model_lst_forward.1} parent=0 // pred_check_branch
    %16 = sbr.rel (0) target = $region13
  $region12: #{model_lst_forward.1} parent=0 // pred_region
    _
  $region13: #{model_lst_forward.1} parent=0 // pred_fallthru
    _
  // Predicated region
  $region14: #{model_lst_forward.1} parent=0 // pred_check
    _
  $region15: #{model_lst_forward.1} parent=0 // pred_check_branch
    %18 = sbr.rel (0) target = $region17
  $region16: #{model_lst_forward.1} parent=0 // pred_region
    _
  $region17: #{model_lst_forward.1} parent=0 // pred_fallthru
    _
  // Predicated region
  $region18: #{model_lst_forward.1} parent=0 // pred_check
    _
  $region19: #{model_lst_forward.1} parent=0 // pred_check_branch
    %20 = sbr.rel (0) target = $region21
  $region20: #{model_lst_forward.1} parent=0 // pred_region
    _
  $region21: #{model_lst_forward.1} parent=0 // pred_fallthru
    _
  // Predicated region
  $region22: #{model_lst_forward.1} parent=0 // pred_check
    _
  $region23: #{model_lst_forward.1} parent=0 // pred_check_branch
    %22 = sbr.rel (0) target = $region25
  $region24: #{model_lst_forward.1} parent=0 // pred_region
    _
  $region25: #{model_lst_forward.1} parent=0 // pred_fallthru
    _
  %v23 = vld [vmem:[%s0] sm:$0xff]
  %v24 = vld [vmem:[%s0 + $0x8] sm:$0xff]
  %v25 = vld [vmem:[%s1] sm:$0xff]
  %v26 = vld [vmem:[%s1 + $0x8] sm:$0xff]
  %v27 = vld [vmem:[%s3] sm:$0x1]
  %v29 = vperm.slane %v27, 0
  %vm31 = vcmask 130048
  %v33 = vsel %vm31, %v23, 0
  %v36 = vsel %vm31, %v24, 0
  %38 = vmatpush.msra.mxu0 0.0
  %39 = vmatpush.msra.mxu0 0.0
  %40 = vmatpush.msra.mxu0 0.0
  %41 = vmatpush.msra.mxu0 0.0
  %42 = vmatpush.msra.mxu0 0.0
  %43 = vmatpush.msra.mxu0 0.0
  %44 = vmatpush.msra.mxu0 0.0
  %45 = vmatpush.msra.mxu0 0.0
  %46 = vmatpush.msra.mxu0 0.0
  %47 = vmatpush.msra.mxu0 0.0
  %48 = vmatpush.msra.mxu0 0.0
  %49 = vmatpush.msra.mxu0 0.0
  %50 = vmatpush.msra.mxu0 0.0
  %51 = vmatpush.msra.mxu0 0.0
  %52 = vmatpush.msra.mxu0 %v26
  %53 = vmatpush.msra.mxu0 %v25
  %54 = vmatmul.f32.gmra.mxu0 %v33
  %v55 = vpop.f32.mrf.mxu0
  %v56 = vadd.f32 %v29, %v55
  %57 = vmatmul.f32.gmra.mxu0 %v36
  %v58 = vpop.f32.mrf.mxu0
  %v59 = vadd.f32 %v29, %v58
  %60 = vdwg.mxu0
  %v61 = vld [vmem:[%s2] sm:$0xff]
  %v62 = vld [vmem:[%s2 + $0x8] sm:$0xff]
  %v63 = vld [vmem:[%s2 + $0x10] sm:$0xff]
  %v64 = vld [vmem:[%s2 + $0x18] sm:$0xff]
  %v65 = vlaneseq
  %v66 = vand.u32 %v65, 127
  %vm67 = vcmp.ge.s32.totalorder %v66, 64
  %vm68 = vcmp.lt.s32.totalorder %v66, 96
  %vm69 = vmand %vm67, %vm68
  %vm70 = vcmask 261120
  %v72 = vsel %vm70, 0.0, 0
  %74 = vmatpush.msra.mxu0 0.0
  %75 = vmatpush.msra.mxu0 0.0
  %76 = vmatpush.msra.mxu0 0.0
  %77 = vmatpush.msra.mxu0 0.0
  %78 = vmatpush.msra.mxu0 0.0
  %79 = vmatpush.msra.mxu0 0.0
  %80 = vmatpush.msra.mxu0 0.0
  %81 = vmatpush.msra.mxu0 0.0
  %82 = vmatpush.msra.mxu0 0.0
  %83 = vmatpush.msra.mxu0 0.0
  %84 = vmatpush.msra.mxu0 0.0
  %85 = vmatpush.msra.mxu0 0.0
  %86 = vmatpush.msra.mxu0 %v64
  %87 = vmatpush.msra.mxu0 %v63
  %88 = vmatpush.msra.mxu0 %v62
  %89 = vmatpush.msra.mxu0 %v61
  %90 = vmatmul.f32.gmra.mxu0 %v72
  %v91 = vpop.f32.mrf.mxu0
  %v92 = vadd.f32 0.0, %v91
  %93 = vdwg.mxu0
  %v94 = vadd.f32 %v56, %v92
  %v95 = vxor.u32 %v94, 2147483648
  %v96 = vmul.f32 %v95, 1.442695
  %v97 = vpow.pop %v96
  %v98 = vadd.f32 %v97, 1.0
  %v99 = vrcp.pop %v98
  %v100 = vmul.f32 %v98, %v99
  %v101 = vsub.f32 1.0, %v100
  %v102 = vmul.f32 %v99, %v101
  %v103 = vadd.f32 %v99, %v102
  %vm104 = vweird.f32 %v98
  %vm105 = vweird.f32 %v99
  %vm106 = vmor %vm104, %vm105
  %v107 = vsel %vm106, %v99, %v103
  %v108 = vand.u32 2147483647, %v98
  %vm109 = vcmp.eq.f32.partialorder %v108, 8.507059e+37
  %v110 = vand.u32 %v98, 2147483648
  %v111 = vor.u32 1.1754944e-38, %v110
  %v112 = vsel %vm109, %v111, %v107
  %v113 = vmul.f32 1.0, %v112
  %v114 = vadd.f32 %v113, %v113
  %v115 = vsub.f32 %v114, 1.0
  %v116 = vsel %vm69, %v115, %v113
  %v117 = vmul.f32 %v116, 0.0
  %119 = vrot.lane.b32.xlu0 %v116, 64
  %v120 = vpop.permute.xlu0 %119
  %v122 = vmul.f32 %v116, %v120
  %124 = vrot.lane.b32.xlu0 %v122, 32
  %v125 = vpop.permute.xlu0 %124
  %v127 = vadd.f32 %v117, %v125
  %v128 = vtanh.pop %v127
  %130 = vrot.lane.b32.xlu0 %v128, 64
  %v131 = vpop.permute.xlu0 %130
  %v133 = vmul.f32 %v116, %v131
  %135 = vrot.lane.b32.xlu0 %v133, 32
  %v136 = vpop.permute.xlu0 %135
  %v137 = vsel %vm70, %v136, 0
  %139 = vmatpush.msra.mxu0 0.0
  %140 = vmatpush.msra.mxu0 0.0
  %141 = vmatpush.msra.mxu0 0.0
  %142 = vmatpush.msra.mxu0 0.0
  %143 = vmatpush.msra.mxu0 0.0
  %144 = vmatpush.msra.mxu0 0.0
  %145 = vmatpush.msra.mxu0 0.0
  %146 = vmatpush.msra.mxu0 0.0
  %147 = vmatpush.msra.mxu0 0.0
  %148 = vmatpush.msra.mxu0 0.0
  %149 = vmatpush.msra.mxu0 0.0
  %150 = vmatpush.msra.mxu0 0.0
  %151 = vmatpush.msra.mxu0 %v64
  %152 = vmatpush.msra.mxu0 %v63
  %153 = vmatpush.msra.mxu0 %v62
  %154 = vmatpush.msra.mxu0 %v61
  %155 = vmatmul.f32.gmra.mxu0 %v137
  %v156 = vpop.f32.mrf.mxu0
  %v157 = vadd.f32 0.0, %v156
  %158 = vdwg.mxu0
  %v160 = vrot.slane %v157, 6
  %v162 = vadd.f32 %v56, %v160
  %v163 = vxor.u32 %v162, 2147483648
  %v164 = vmul.f32 %v163, 1.442695
  %v165 = vpow.pop %v164
  %v166 = vadd.f32 %v165, 1.0
  %v167 = vrcp.pop %v166
  %v168 = vmul.f32 %v166, %v167
  %v169 = vsub.f32 1.0, %v168
  %v170 = vmul.f32 %v167, %v169
  %v171 = vadd.f32 %v167, %v170
  %vm172 = vweird.f32 %v166
  %vm173 = vweird.f32 %v167
  %vm174 = vmor %vm172, %vm173
  %v175 = vsel %vm174, %v167, %v171
  %v176 = vand.u32 2147483647, %v166
  %vm177 = vcmp.eq.f32.partialorder %v176, 8.507059e+37
  %v178 = vand.u32 %v166, 2147483648
  %v179 = vor.u32 1.1754944e-38, %v178
  %v180 = vsel %vm177, %v179, %v175
  %v181 = vmul.f32 1.0, %v180
  %v182 = vadd.f32 %v181, %v181
  %v183 = vsub.f32 %v182, 1.0
  %v184 = vsel %vm69, %v183, %v181
  %v186 = vrot.slane %v127, 6
  %v188 = vmul.f32 %v184, %v186
  %190 = vrot.lane.b32.xlu0 %v184, 64
  %v191 = vpop.permute.xlu0 %190
  %v193 = vmul.f32 %v184, %v191
  %195 = vrot.lane.b32.xlu0 %v193, 32
  %v196 = vpop.permute.xlu0 %195
  %v198 = vadd.f32 %v188, %v196
  %v199 = vtanh.pop %v198
  %201 = vrot.lane.b32.xlu0 %v199, 64
  %v202 = vpop.permute.xlu0 %201
  %v204 = vmul.f32 %v184, %v202
  %v206 = vrot.slane %v204, 2
  %207 = vrot.lane.b32.xlu0 %v206, 32
  %v208 = vpop.permute.xlu0 %207
  %v209 = vsel %vm70, %v208, 0
  %211 = vmatpush.msra.mxu0 0.0
  %212 = vmatpush.msra.mxu0 0.0
  %213 = vmatpush.msra.mxu0 0.0
  %214 = vmatpush.msra.mxu0 0.0
  %215 = vmatpush.msra.mxu0 0.0
  %216 = vmatpush.msra.mxu0 0.0
  %217 = vmatpush.msra.mxu0 0.0
  %218 = vmatpush.msra.mxu0 0.0
  %219 = vmatpush.msra.mxu0 0.0
  %220 = vmatpush.msra.mxu0 0.0
  %221 = vmatpush.msra.mxu0 0.0
  %222 = vmatpush.msra.mxu0 0.0
  %223 = vmatpush.msra.mxu0 %v64
  %224 = vmatpush.msra.mxu0 %v63
  %225 = vmatpush.msra.mxu0 %v62
  %226 = vmatpush.msra.mxu0 %v61
  %227 = vmatmul.f32.gmra.mxu0 %v209
  %v228 = vpop.f32.mrf.mxu0
  %v229 = vadd.f32 0.0, %v228
  %230 = vdwg.mxu0
  %v232 = vrot.slane %v229, 4
  %v234 = vadd.f32 %v56, %v232
  %v235 = vxor.u32 %v234, 2147483648
  %v236 = vmul.f32 %v235, 1.442695
  %v237 = vpow.pop %v236
  %v238 = vadd.f32 %v237, 1.0
  %v239 = vrcp.pop %v238
  %v240 = vmul.f32 %v238, %v239
  %v241 = vsub.f32 1.0, %v240
  %v242 = vmul.f32 %v239, %v241
  %v243 = vadd.f32 %v239, %v242
  %vm244 = vweird.f32 %v238
  %vm245 = vweird.f32 %v239
  %vm246 = vmor %vm244, %vm245
  %v247 = vsel %vm246, %v239, %v243
  %v248 = vand.u32 2147483647, %v238
  %vm249 = vcmp.eq.f32.partialorder %v248, 8.507059e+37
  %v250 = vand.u32 %v238, 2147483648
  %v251 = vor.u32 1.1754944e-38, %v250
  %v252 = vsel %vm249, %v251, %v247
  %v253 = vmul.f32 1.0, %v252
  %v254 = vadd.f32 %v253, %v253
  %v255 = vsub.f32 %v254, 1.0
  %v256 = vsel %vm69, %v255, %v253
  %v258 = vrot.slane %v198, 6
  %v260 = vmul.f32 %v256, %v258
  %262 = vrot.lane.b32.xlu0 %v256, 64
  %v263 = vpop.permute.xlu0 %262
  %v265 = vmul.f32 %v256, %v263
  %267 = vrot.lane.b32.xlu0 %v265, 32
  %v268 = vpop.permute.xlu0 %267
  %v270 = vadd.f32 %v260, %v268
  %v271 = vtanh.pop %v270
  %273 = vrot.lane.b32.xlu0 %v271, 64
  %v274 = vpop.permute.xlu0 %273
  %v276 = vmul.f32 %v256, %v274
  %v278 = vrot.slane %v276, 4
  %279 = vrot.lane.b32.xlu0 %v278, 32
  %v280 = vpop.permute.xlu0 %279
  %v281 = vsel %vm70, %v280, 0
  %283 = vmatpush.msra.mxu0 0.0
  %284 = vmatpush.msra.mxu0 0.0
  %285 = vmatpush.msra.mxu0 0.0
  %286 = vmatpush.msra.mxu0 0.0
  %287 = vmatpush.msra.mxu0 0.0
  %288 = vmatpush.msra.mxu0 0.0
  %289 = vmatpush.msra.mxu0 0.0
  %290 = vmatpush.msra.mxu0 0.0
  %291 = vmatpush.msra.mxu0 0.0
  %292 = vmatpush.msra.mxu0 0.0
  %293 = vmatpush.msra.mxu0 0.0
  %294 = vmatpush.msra.mxu0 0.0
  %295 = vmatpush.msra.mxu0 %v64
  %296 = vmatpush.msra.mxu0 %v63
  %297 = vmatpush.msra.mxu0 %v62
  %298 = vmatpush.msra.mxu0 %v61
  %299 = vmatmul.f32.gmra.mxu0 %v281
  %v300 = vpop.f32.mrf.mxu0
  %v301 = vadd.f32 0.0, %v300
  %302 = vdwg.mxu0
  %v304 = vrot.slane %v301, 2
  %v306 = vadd.f32 %v56, %v304
  %v307 = vxor.u32 %v306, 2147483648
  %v308 = vmul.f32 %v307, 1.442695
  %v309 = vpow.pop %v308
  %v310 = vadd.f32 %v309, 1.0
  %v311 = vrcp.pop %v310
  %v312 = vmul.f32 %v310, %v311
  %v313 = vsub.f32 1.0, %v312
  %v314 = vmul.f32 %v311, %v313
  %v315 = vadd.f32 %v311, %v314
  %vm316 = vweird.f32 %v310
  %vm317 = vweird.f32 %v311
  %vm318 = vmor %vm316, %vm317
  %v319 = vsel %vm318, %v311, %v315
  %v320 = vand.u32 2147483647, %v310
  %vm321 = vcmp.eq.f32.partialorder %v320, 8.507059e+37
  %v322 = vand.u32 %v310, 2147483648
  %v323 = vor.u32 1.1754944e-38, %v322
  %v324 = vsel %vm321, %v323, %v319
  %v325 = vmul.f32 1.0, %v324
  %v326 = vadd.f32 %v325, %v325
  %v327 = vsub.f32 %v326, 1.0
  %v328 = vsel %vm69, %v327, %v325
  %v330 = vrot.slane %v270, 6
  %v332 = vmul.f32 %v328, %v330
  %334 = vrot.lane.b32.xlu0 %v328, 64
  %v335 = vpop.permute.xlu0 %334
  %v337 = vmul.f32 %v328, %v335
  %339 = vrot.lane.b32.xlu0 %v337, 32
  %v340 = vpop.permute.xlu0 %339
  %v342 = vadd.f32 %v332, %v340
  %v343 = vtanh.pop %v342
  %345 = vrot.lane.b32.xlu0 %v343, 64
  %v346 = vpop.permute.xlu0 %345
  %v348 = vmul.f32 %v328, %v346
  %v350 = vrot.slane %v348, 6
  %351 = vrot.lane.b32.xlu0 %v350, 32
  %v352 = vpop.permute.xlu0 %351
  %v353 = vsel %vm70, %v352, 0
  %355 = vmatpush.msra.mxu0 0.0
  %356 = vmatpush.msra.mxu0 0.0
  %357 = vmatpush.msra.mxu0 0.0
  %358 = vmatpush.msra.mxu0 0.0
  %359 = vmatpush.msra.mxu0 0.0
  %360 = vmatpush.msra.mxu0 0.0
  %361 = vmatpush.msra.mxu0 0.0
  %362 = vmatpush.msra.mxu0 0.0
  %363 = vmatpush.msra.mxu0 0.0
  %364 = vmatpush.msra.mxu0 0.0
  %365 = vmatpush.msra.mxu0 0.0
  %366 = vmatpush.msra.mxu0 0.0
  %367 = vmatpush.msra.mxu0 %v64
  %368 = vmatpush.msra.mxu0 %v63
  %369 = vmatpush.msra.mxu0 %v62
  %370 = vmatpush.msra.mxu0 %v61
  %371 = vmatmul.f32.gmra.mxu0 %v353
  %v372 = vpop.f32.mrf.mxu0
  %v373 = vadd.f32 0.0, %v372
  %374 = vdwg.mxu0
  %v375 = vadd.f32 %v59, %v373
  %v376 = vxor.u32 %v375, 2147483648
  %v377 = vmul.f32 %v376, 1.442695
  %v378 = vpow.pop %v377
  %v379 = vadd.f32 %v378, 1.0
  %v380 = vrcp.pop %v379
  %v381 = vmul.f32 %v379, %v380
  %v382 = vsub.f32 1.0, %v381
  %v383 = vmul.f32 %v380, %v382
  %v384 = vadd.f32 %v380, %v383
  %vm385 = vweird.f32 %v379
  %vm386 = vweird.f32 %v380
  %vm387 = vmor %vm385, %vm386
  %v388 = vsel %vm387, %v380, %v384
  %v389 = vand.u32 2147483647, %v379
  %vm390 = vcmp.eq.f32.partialorder %v389, 8.507059e+37
  %v391 = vand.u32 %v379, 2147483648
  %v392 = vor.u32 1.1754944e-38, %v391
  %v393 = vsel %vm390, %v392, %v388
  %v394 = vmul.f32 1.0, %v393
  %v395 = vadd.f32 %v394, %v394
  %v396 = vsub.f32 %v395, 1.0
  %v397 = vsel %vm69, %v396, %v394
  %v399 = vrot.slane %v342, 6
  %v401 = vmul.f32 %v397, %v399
  %403 = vrot.lane.b32.xlu0 %v397, 64
  %v404 = vpop.permute.xlu0 %403
  %v406 = vmul.f32 %v397, %v404
  %408 = vrot.lane.b32.xlu0 %v406, 32
  %v409 = vpop.permute.xlu0 %408
  %v411 = vadd.f32 %v401, %v409
  %v412 = vtanh.pop %v411
  %414 = vrot.lane.b32.xlu0 %v412, 64
  %v415 = vpop.permute.xlu0 %414
  %v417 = vmul.f32 %v397, %v415
  %419 = vrot.lane.b32.xlu0 %v417, 32
  %v420 = vpop.permute.xlu0 %419
  %v421 = vsel %vm70, %v420, 0
  %423 = vmatpush.msra.mxu0 0.0
  %424 = vmatpush.msra.mxu0 0.0
  %425 = vmatpush.msra.mxu0 0.0
  %426 = vmatpush.msra.mxu0 0.0
  %427 = vmatpush.msra.mxu0 0.0
  %428 = vmatpush.msra.mxu0 0.0
  %429 = vmatpush.msra.mxu0 0.0
  %430 = vmatpush.msra.mxu0 0.0
  %431 = vmatpush.msra.mxu0 0.0
  %432 = vmatpush.msra.mxu0 0.0
  %433 = vmatpush.msra.mxu0 0.0
  %434 = vmatpush.msra.mxu0 0.0
  %435 = vmatpush.msra.mxu0 %v64
  %436 = vmatpush.msra.mxu0 %v63
  %437 = vmatpush.msra.mxu0 %v62
  %438 = vmatpush.msra.mxu0 %v61
  %439 = vmatmul.f32.gmra.mxu0 %v421
  %v440 = vpop.f32.mrf.mxu0
  %v441 = vadd.f32 0.0, %v440
  %442 = vdwg.mxu0
  %v444 = vrot.slane %v441, 6
  %v446 = vadd.f32 %v59, %v444
  %v447 = vxor.u32 %v446, 2147483648
  %v448 = vmul.f32 %v447, 1.442695
  %v449 = vpow.pop %v448
  %v450 = vadd.f32 %v449, 1.0
  %v451 = vrcp.pop %v450
  %v452 = vmul.f32 %v450, %v451
  %v453 = vsub.f32 1.0, %v452
  %v454 = vmul.f32 %v451, %v453
  %v455 = vadd.f32 %v451, %v454
  %vm456 = vweird.f32 %v450
  %vm457 = vweird.f32 %v451
  %vm458 = vmor %vm456, %vm457
  %v459 = vsel %vm458, %v451, %v455
  %v460 = vand.u32 2147483647, %v450
  %vm461 = vcmp.eq.f32.partialorder %v460, 8.507059e+37
  %v462 = vand.u32 %v450, 2147483648
  %v463 = vor.u32 1.1754944e-38, %v462
  %v464 = vsel %vm461, %v463, %v459
  %v465 = vmul.f32 1.0, %v464
  %v466 = vadd.f32 %v465, %v465
  %v467 = vsub.f32 %v466, 1.0
  %v468 = vsel %vm69, %v467, %v465
  %v470 = vrot.slane %v411, 6
  %v472 = vmul.f32 %v468, %v470
  %474 = vrot.lane.b32.xlu0 %v468, 64
  %v475 = vpop.permute.xlu0 %474
  %v477 = vmul.f32 %v468, %v475
  %479 = vrot.lane.b32.xlu0 %v477, 32
  %v480 = vpop.permute.xlu0 %479
  %v482 = vadd.f32 %v472, %v480
  %v483 = vtanh.pop %v482
  %485 = vrot.lane.b32.xlu0 %v483, 64
  %v486 = vpop.permute.xlu0 %485
  %v488 = vmul.f32 %v468, %v486
  %v490 = vrot.slane %v488, 2
  %491 = vrot.lane.b32.xlu0 %v490, 32
  %v492 = vpop.permute.xlu0 %491
  %v493 = vsel %vm70, %v492, 0
  %495 = vmatpush.msra.mxu0 0.0
  %496 = vmatpush.msra.mxu0 0.0
  %497 = vmatpush.msra.mxu0 0.0
  %498 = vmatpush.msra.mxu0 0.0
  %499 = vmatpush.msra.mxu0 0.0
  %500 = vmatpush.msra.mxu0 0.0
  %501 = vmatpush.msra.mxu0 0.0
  %502 = vmatpush.msra.mxu0 0.0
  %503 = vmatpush.msra.mxu0 0.0
  %504 = vmatpush.msra.mxu0 0.0
  %505 = vmatpush.msra.mxu0 0.0
  %506 = vmatpush.msra.mxu0 0.0
  %507 = vmatpush.msra.mxu0 %v64
  %508 = vmatpush.msra.mxu0 %v63
  %509 = vmatpush.msra.mxu0 %v62
  %510 = vmatpush.msra.mxu0 %v61
  %511 = vmatmul.f32.gmra.mxu0 %v493
  %v512 = vpop.f32.mrf.mxu0
  %v513 = vadd.f32 0.0, %v512
  %514 = vdwg.mxu0
  %v516 = vrot.slane %v513, 4
  %v518 = vadd.f32 %v59, %v516
  %v519 = vxor.u32 %v518, 2147483648
  %v520 = vmul.f32 %v519, 1.442695
  %v521 = vpow.pop %v520
  %v522 = vadd.f32 %v521, 1.0
  %v523 = vrcp.pop %v522
  %v524 = vmul.f32 %v522, %v523
  %v525 = vsub.f32 1.0, %v524
  %v526 = vmul.f32 %v523, %v525
  %v527 = vadd.f32 %v523, %v526
  %vm528 = vweird.f32 %v522
  %vm529 = vweird.f32 %v523
  %vm530 = vmor %vm528, %vm529
  %v531 = vsel %vm530, %v523, %v527
  %v532 = vand.u32 2147483647, %v522
  %vm533 = vcmp.eq.f32.partialorder %v532, 8.507059e+37
  %v534 = vand.u32 %v522, 2147483648
  %v535 = vor.u32 1.1754944e-38, %v534
  %v536 = vsel %vm533, %v535, %v531
  %v537 = vmul.f32 1.0, %v536
  %v538 = vadd.f32 %v537, %v537
  %v539 = vsub.f32 %v538, 1.0
  %v540 = vsel %vm69, %v539, %v537
  %v542 = vrot.slane %v482, 6
  %v544 = vmul.f32 %v540, %v542
  %546 = vrot.lane.b32.xlu0 %v540, 64
  %v547 = vpop.permute.xlu0 %546
  %v549 = vmul.f32 %v540, %v547
  %551 = vrot.lane.b32.xlu0 %v549, 32
  %v552 = vpop.permute.xlu0 %551
  %v554 = vadd.f32 %v544, %v552
  %v555 = vtanh.pop %v554
  %557 = vrot.lane.b32.xlu0 %v555, 64
  %v558 = vpop.permute.xlu0 %557
  %v560 = vmul.f32 %v540, %v558
  %v562 = vrot.slane %v560, 4
  %563 = vrot.lane.b32.xlu0 %v562, 32
  %v564 = vpop.permute.xlu0 %563
  %v565 = vsel %vm70, %v564, 0
  %567 = vmatpush.msra.mxu0 0.0
  %568 = vmatpush.msra.mxu0 0.0
  %569 = vmatpush.msra.mxu0 0.0
  %570 = vmatpush.msra.mxu0 0.0
  %571 = vmatpush.msra.mxu0 0.0
  %572 = vmatpush.msra.mxu0 0.0
  %573 = vmatpush.msra.mxu0 0.0
  %574 = vmatpush.msra.mxu0 0.0
  %575 = vmatpush.msra.mxu0 0.0
  %576 = vmatpush.msra.mxu0 0.0
  %577 = vmatpush.msra.mxu0 0.0
  %578 = vmatpush.msra.mxu0 0.0
  %579 = vmatpush.msra.mxu0 %v64
  %580 = vmatpush.msra.mxu0 %v63
  %581 = vmatpush.msra.mxu0 %v62
  %582 = vmatpush.msra.mxu0 %v61
  %583 = vmatmul.f32.gmra.mxu0 %v565
  %v584 = vpop.f32.mrf.mxu0
  %v585 = vadd.f32 0.0, %v584
  %586 = vdwg.mxu0
  %v588 = vrot.slane %v585, 2
  %v590 = vadd.f32 %v59, %v588
  %v591 = vxor.u32 %v590, 2147483648
  %v592 = vmul.f32 %v591, 1.442695
  %v593 = vpow.pop %v592
  %v594 = vadd.f32 %v593, 1.0
  %v595 = vrcp.pop %v594
  %v596 = vmul.f32 %v594, %v595
  %v597 = vsub.f32 1.0, %v596
  %v598 = vmul.f32 %v595, %v597
  %v599 = vadd.f32 %v595, %v598
  %vm600 = vweird.f32 %v594
  %vm601 = vweird.f32 %v595
  %vm602 = vmor %vm600, %vm601
  %v603 = vsel %vm602, %v595, %v599
  %v604 = vand.u32 2147483647, %v594
  %vm605 = vcmp.eq.f32.partialorder %v604, 8.507059e+37
  %v606 = vand.u32 %v594, 2147483648
  %v607 = vor.u32 1.1754944e-38, %v606
  %v608 = vsel %vm605, %v607, %v603
  %v609 = vmul.f32 1.0, %v608
  %v610 = vadd.f32 %v609, %v609
  %v611 = vsub.f32 %v610, 1.0
  %v612 = vsel %vm69, %v611, %v609
  %v614 = vrot.slane %v554, 6
  %v616 = vmul.f32 %v612, %v614
  %618 = vrot.lane.b32.xlu0 %v612, 64
  %v619 = vpop.permute.xlu0 %618
  %v621 = vmul.f32 %v612, %v619
  %623 = vrot.lane.b32.xlu0 %v621, 32
  %v624 = vpop.permute.xlu0 %623
  %v626 = vadd.f32 %v616, %v624
  %v627 = vtanh.pop %v626
  %629 = vrot.lane.b32.xlu0 %v627, 64
  %v630 = vpop.permute.xlu0 %629
  %v632 = vmul.f32 %v612, %v630
  %vm633 = vcmask 1041408
  %v634 = vsel %vm633, %v133, %v204
  %vm635 = vcmask 1043456
  %v636 = vsel %vm635, %v634, %v276
  %vm637 = vcmask 1045504
  %v638 = vsel %vm637, %v636, %v348
  %v639 = vsel %vm633, %v417, %v488
  %v640 = vsel %vm635, %v639, %v560
  %v641 = vsel %vm637, %v640, %v632
  %v642 = vld [vmem:[%s4] sm:$0xff]
  %v643 = vld [vmem:[%s4 + $0x8] sm:$0xff]
  %v644 = vld [vmem:[%s4 + $0x10] sm:$0xff]
  %v645 = vld [vmem:[%s4 + $0x18] sm:$0xff]
  %v646 = vld [vmem:[%s5] sm:$0x1]
  %v648 = vperm.slane %v646, 0
  %652 = vrot.lane.b32.xlu0 %v638, 32
  %v653 = vpop.permute.xlu0 %652
  %654 = vrot.lane.b32.xlu0 %v641, 32
  %v655 = vpop.permute.xlu0 %654
  %v656 = vsel %vm70, %v653, 0
  %v658 = vsel %vm70, %v655, 0
  %660 = vmatpush.msra.mxu0 0.0
  %661 = vmatpush.msra.mxu0 0.0
  %662 = vmatpush.msra.mxu0 0.0
  %663 = vmatpush.msra.mxu0 0.0
  %664 = vmatpush.msra.mxu0 0.0
  %665 = vmatpush.msra.mxu0 0.0
  %666 = vmatpush.msra.mxu0 0.0
  %667 = vmatpush.msra.mxu0 0.0
  %668 = vmatpush.msra.mxu0 0.0
  %669 = vmatpush.msra.mxu0 0.0
  %670 = vmatpush.msra.mxu0 0.0
  %671 = vmatpush.msra.mxu0 0.0
  %672 = vmatpush.msra.mxu0 %v645
  %673 = vmatpush.msra.mxu0 %v644
  %674 = vmatpush.msra.mxu0 %v643
  %675 = vmatpush.msra.mxu0 %v642
  %676 = vmatmul.f32.gmra.mxu0 %v656
  %v677 = vpop.f32.mrf.mxu0
  %v678 = vadd.f32 %v648, %v677
  %679 = vmatmul.f32.gmra.mxu0 %v658
  %v680 = vpop.f32.mrf.mxu0
  %v681 = vadd.f32 %v648, %v680
  %682 = vdwg.mxu0
  %vm683 = vcmask 64512
  %684 = vst.msk [vmem:[%s6] sm:$0xff] %vm683, %v678
  %685 = vst.msk [vmem:[%s6 + $0x8] sm:$0xff] %vm683, %v681
  // Predicated region
  $region26: #{model_lst_forward.1} parent=0 // pred_check
    _
  $region27: #{model_lst_forward.1} parent=0 // pred_check_branch
    %687 = sbr.rel (0) target = $region29
  $region28: #{model_lst_forward.1} parent=0 // pred_region
    _
  $region29: #{model_lst_forward.1} parent=0 // pred_fallthru
    _
  // Predicated region
  $region30: #{model_lst_forward.1} parent=0 // pred_check
    _
  $region31: #{model_lst_forward.1} parent=0 // pred_check_branch
    %689 = sbr.rel (0) target = $region33
  $region32: #{model_lst_forward.1} parent=0 // pred_region
    _
  $region33: #{model_lst_forward.1} parent=0 // pred_fallthru
    _

</llo_original>
